<compile_context>
chip_gen: v7x
topology: tpu7x:2x2x1
jax: 0.10.0
libtpu: 0.0.40
codegen_flags: <defaults>
</compile_context>

<pallas_src>
import math
import functools

import jax
import jax.numpy as jnp
from jax import lax
from jax.experimental import pallas as pl
from jax.experimental.pallas import tpu as pltpu

_TARGET_TILE_BYTES = 2 * 1024 * 1024  # per-stream tile; ~12 MiB total with double buffering


def _build_pe(seq_len: int, d_model: int) -> jnp.ndarray:
    """Plain-JAX glue: build the (seq_len, d_model) sinusoidal table (matches PyTorch)."""
    position = jnp.arange(seq_len, dtype=jnp.float32)[:, None]              # (S, 1)
    div_term = jnp.exp(jnp.arange(0, d_model, 2, dtype=jnp.float32)
                       * -(math.log(10000.0) / d_model))                    # (D/2,)
    ang = position * div_term                                               # (S, D/2)
    # interleave: even cols = sin, odd cols = cos
    pe = jnp.stack([jnp.sin(ang), jnp.cos(ang)], axis=-1).reshape(seq_len, d_model)
    return pe.astype(jnp.float32)


def _pick_tiles(B: int, C: int, itemsize: int):
    """Choose (row_tile, col_tile) for the (B, C=S*D) slab.

    Column tile is a multiple of 128 (lane-dense) whenever C allows; row tile is
    the full batch or a multiple of 8.  Per-tile footprint targets ~2 MiB so the
    double-buffered streams stay well inside v7x's 64 MiB VMEM.
    """
    target = max(128, _TARGET_TILE_BYTES // itemsize)      # elements per tile
    min_rows = B if B < 8 else 8
    if C <= 128:
        tc = C                                             # full dim -> allowed
    else:
        tc = min(C, max(128, (target // min_rows) // 128 * 128))
        tc = max(128, tc // 128 * 128)
        if C % 128 == 0:                                   # prefer an exact divisor
            while tc > 128 and C % tc != 0:
                tc -= 128
    rows_budget = max(min_rows, target // tc)
    if B <= max(rows_budget, 8):
        tb = B                                             # full dim -> allowed
    else:
        tb = max(8, rows_budget // 8 * 8)                  # multiple of 8
    return tb, tc


def _add_pe_kernel(x_ref, pe_ref, o_ref):
    """Eval path: pure elementwise add, computed in the activation dtype."""
    o_ref[...] = x_ref[...] + pe_ref[...]


def _add_pe_dropout_kernel(x_ref, pe_ref, bits_ref, o_ref, *, threshold: int, scale: float):
    """Training path: add + inverted dropout via an integer-domain threshold test."""
    y = x_ref[...] + pe_ref[...]
    keep = bits_ref[...] >= jnp.int32(threshold)           # P(keep) = 1 - p
    o_ref[...] = jnp.where(keep, y * jnp.asarray(scale, y.dtype), jnp.zeros_like(y))


def positional_encoding(x: jnp.ndarray, pe: jnp.ndarray, *,
                        dropout_p: float = 0.0, training: bool = False,
                        rng_key=None) -> jnp.ndarray:
    """x: (B, S, D); pe: (S_full, D) with S <= S_full. Matches PositionalEncoding.forward."""
    B, S, D = x.shape
    C = S * D
    x2 = x.reshape(B, C)                                   # free, contiguous view
    pe2 = pe[:S, :].astype(x.dtype).reshape(1, C)          # pe in the activation dtype

    tb, tc = _pick_tiles(B, C, jnp.dtype(x.dtype).itemsize)
    grid = (pl.cdiv(B, tb), pl.cdiv(C, tc))
    x_spec = pl.BlockSpec((tb, tc), lambda i, j: (i, j))
    pe_spec = pl.BlockSpec((1, tc), lambda i, j: (0, j))   # shared across row blocks
    bits_spec = pl.BlockSpec((tb, tc), lambda i, j: (i, j))
    out_spec = pl.BlockSpec((tb, tc), lambda i, j: (i, j))
    cparams = pltpu.CompilerParams(
        dimension_semantics=("parallel", "parallel"),
        vmem_limit_bytes=48 * 1024 * 1024)                 # headroom under v7x's 64 MiB

    p = float(dropout_p) if training else 0.0
    if p <= 0.0:
        out2 = pl.pallas_call(
            _add_pe_kernel,
            out_shape=jax.ShapeDtypeStruct((B, C), x.dtype),
            grid_spec=pltpu.PrefetchScalarGridSpec(
                num_scalar_prefetch=0, grid=grid,
                in_specs=[x_spec, pe_spec],
                out_specs=out_spec),
            compiler_params=cparams,
        )(x2, pe2)
    elif p >= 1.0:
        return jnp.zeros_like(x)
    else:
        if rng_key is None:
            rng_key = jax.random.PRNGKey(0)
        # Uniform 32-bit draws, viewed as int32 so the in-kernel compare is a plain
        # signed compare (supported everywhere).  P(bits < threshold) == p.
        bits = lax.bitcast_convert_type(
            jax.random.bits(rng_key, (B, C), dtype=jnp.uint32), jnp.int32)
        threshold = int(round(p * float(2 ** 32))) - 2 ** 31
        threshold = max(-(2 ** 31), min(threshold, 2 ** 31 - 1))
        scale = 1.0 / (1.0 - p)
        kernel = functools.partial(_add_pe_dropout_kernel,
                                   threshold=threshold, scale=scale)
        out2 = pl.pallas_call(
            kernel,
            out_shape=jax.ShapeDtypeStruct((B, C), x.dtype),
            grid_spec=pltpu.PrefetchScalarGridSpec(
                num_scalar_prefetch=0, grid=grid,
                in_specs=[x_spec, pe_spec, bits_spec],
                out_specs=out_spec),
            compiler_params=cparams,
        )(x2, pe2, bits)
    return out2.reshape(B, S, D)


if __name__ == "__main__":
    # Module hyper-params (small, consistent with the forward pass)
    d_model = 32
    seq_len = 8
    dropout = 0.1
    batch = 2

    root = jax.random.PRNGKey(0)
    kx, kdrop = jax.random.split(root)
    x = jax.random.normal(kx, (batch, seq_len, d_model), dtype=jnp.float32)
    pe = _build_pe(seq_len, d_model)

    # Eval-mode forward (dropout is identity) — verify against pure-JAX reference.
    out_eval = jax.block_until_ready(
        positional_encoding(x, pe, dropout_p=dropout, training=False))
    ref = x + pe[None, :, :]
    assert out_eval.shape == x.shape and out_eval.dtype == x.dtype
    assert jnp.allclose(out_eval, ref, atol=1e-5, rtol=1e-5)

    # Training-mode forward (inverted dropout) — each element is either 0 or ref/(1-p).
    out_train = jax.block_until_ready(
        positional_encoding(x, pe, dropout_p=dropout, training=True, rng_key=kdrop))
    assert out_train.shape == x.shape and out_train.dtype == x.dtype
    kept = ref / (1.0 - dropout)
    ok = (jnp.isclose(out_train, 0.0, atol=1e-6)
          | jnp.isclose(out_train, kept, rtol=1e-4, atol=1e-5))
    assert bool(jnp.all(ok))

    print("KERNEL_OK")
</pallas_src>

<mosaic_0001>
module attributes {stable_mosaic.version = 11 : i64} {
  func.func @_add_pe_kernel(%arg0: i32, %arg1: i32, %arg2: memref<2x256xf32, #tpu.memory_space<vmem>>, %arg3: memref<1x256xf32, #tpu.memory_space<vmem>>, %arg4: memref<2x256xf32, #tpu.memory_space<vmem>>) attributes {dimension_semantics = [#tpu.dimension_semantics<parallel>, #tpu.dimension_semantics<parallel>], iteration_bounds = array<i64: 1, 1>, scalar_prefetch = 0 : i64, scratch_operands = 0 : i64, tpu.core_type = #tpu.core_type<tc>, window_params = [{transform_indices = @transform_0, window_bounds = array<i64: 2, 256>}, {transform_indices = @transform_1, window_bounds = array<i64: 1, 256>}, {transform_indices = @transform_2, window_bounds = array<i64: 2, 256>}]} {
    %c0 = arith.constant 0 : index
    %c0_0 = arith.constant 0 : index
    %0 = vector.load %arg2[%c0, %c0_0] : memref<2x256xf32, #tpu.memory_space<vmem>>, vector<2x256xf32>
    %c0_1 = arith.constant 0 : index
    %c0_2 = arith.constant 0 : index
    %1 = vector.load %arg3[%c0_1, %c0_2] : memref<1x256xf32, #tpu.memory_space<vmem>>, vector<1x256xf32>
    %2 = vector.broadcast %1 : vector<1x256xf32> to vector<2x256xf32>
    %3 = arith.addf %0, %2 : vector<2x256xf32>
    %c0_3 = arith.constant 0 : index
    %c0_4 = arith.constant 0 : index
    %4 = vector.load %arg4[%c0_3, %c0_4] : memref<2x256xf32, #tpu.memory_space<vmem>>, vector<2x256xf32>
    tpu.vector_store %arg4[%c0_3, %c0_4], %3 {strides = array<i32>} : memref<2x256xf32, #tpu.memory_space<vmem>>, vector<2x256xf32>,
    return
  }
  func.func @transform_0(%arg0: i32, %arg1: i32) -> (i32, i32) {
    %c0_i32 = arith.constant 0 : i32
    return %arg0, %arg1 : i32, i32
  }
  func.func @transform_1(%arg0: i32, %arg1: i32) -> (i32, i32) {
    %c0_i32 = arith.constant 0 : i32
    %c0_i32_0 = arith.constant 0 : i32
    return %c0_i32, %arg1 : i32, i32
  }
  func.func @transform_2(%arg0: i32, %arg1: i32) -> (i32, i32) {
    %c0_i32 = arith.constant 0 : i32
    return %arg0, %arg1 : i32, i32
  }
}

</mosaic_0001>

<llo_original>
// kernel: tpu_custom_call.1
$region0: #{tpu_custom_call.1}
  #allocation0 [shape = 'u32[]', space=smem, size = 0x4, offset = 0x4, fixed_abs, tag = 'smem constant byte address 0x4 - core index']
  #allocation1 [shape = 'u32[144,128]{1,0:T(1,128)}', space=vmem, size = 0x12000, scoped, tag = 'internal scratch']
  %s0 = inlined_call_operand.hbm [shape: f32[2,256], index: 0, kind: input, shape index: {}]
  %s1 = inlined_call_operand.vmem [shape: f32[1,256], index: 1, kind: input, shape index: {}]
  %s2 = inlined_call_operand.hbm [shape: f32[2,256], index: 2, kind: output, shape index: {}]
  %s3 = sld [smem:[#allocation0]]
  $region22: #{tpu_custom_call.1} parent=0
    _
  %s5 = ssub.s32 1, %s3
  %s6 = scalar_select 0, %s5, %s3
  $region1: #{tpu_custom_call.1} parent=0
    #allocation2 [shape = 'u8[2048]{0}', space=vmem, size = 0x800, scoped, tag = 'input window, operand 0, single buffered']
    #allocation3 [shape = 's32[1]{0}', space=sflag, size = 0x4, scoped, tag = 'scoped memory for tpu_custom_call.1']
    #allocation4 [shape = 's32[1]{0}', space=sflag, size = 0x4, scoped, tag = 'scoped memory for tpu_custom_call.1']
    #allocation5 [shape = 'u8[2048]{0}', space=vmem, size = 0x800, scoped, tag = 'output window, operand 0, single buffered']
    %7 = vsyncpa [#allocation3], 0
    %8 = vsyncpa [#allocation4], 0
    // Predicated region
    $region2: #{tpu_custom_call.1} parent=1 // pred_check
      _
    $region3: #{tpu_custom_call.1} parent=1 // pred_check_branch
      %10 = sbr.rel (0) target = $region5
    $region4: #{tpu_custom_call.1} parent=1 // pred_region
      %s12 = ssub.s32 64, 64
      %13 = vsyncadd [#allocation3], %s12
      %s15 = sshll.u32 [#allocation2], 4
      %s16 = int_to_ptr.vmem [resolvable:$true] %s15
      %18 = dma.hbm_to_vmem [thread:$0]  %s0, 64, %s16, [#allocation3]
    $region5: #{tpu_custom_call.1} parent=1 // pred_fallthru
      _
    // Predicated region
    $region6: #{tpu_custom_call.1} parent=1 // pred_check
      _
    $region7: #{tpu_custom_call.1} parent=1 // pred_check_branch
      %20 = sbr.rel (0) target = $region9
    $region8: #{tpu_custom_call.1} parent=1 // pred_region
      _
    $region9: #{tpu_custom_call.1} parent=1 // pred_fallthru
      _
    // Predicated region
    $region10: #{tpu_custom_call.1} parent=1 // pred_check
      _
    $region11: #{tpu_custom_call.1} parent=1 // pred_check_branch
      %22 = sbr.rel (0) target = $region13
    $region12: #{tpu_custom_call.1} parent=1 // pred_region
      %23 = dma.done [#allocation3], 64
    $region13: #{tpu_custom_call.1} parent=1 // pred_fallthru
      _
    %v24 = vld [vmem:[#allocation2] sm:$0xf]
    %v25 = vld [vmem:[%s1] sm:$0x3]
    %v27 = vlaneseq
    %v28 = vshrl.u32 %v27, 7
    %v29 = vsub.s32 0, %v28
    %v30 = vrot.slane %v25, %v29
    %v31 = vlaneseq
    %v32 = vshrl.u32 %v31, 7
    %v33 = vsub.s32 1, %v32
    %v34 = vrot.slane %v25, %v33
    %v35 = vcombine.low %v30, %v34
    %v37 = vunpack.c.l.s4 1983009808
    %v38 = vunpack.c.0.s8 %v37
    %v39 = vlaneseq
    %v40 = vshrl.u32 %v39, 7
    %v41 = vsub.s32 %v38, %v40
    %v42 = vrot.slane %v35, %v41
    %v44 = vadd.f32 %v24, %v42
    %45 = vst [vmem:[#allocation5] sm:$0xf] %v44
    // Predicated region
    $region14: #{tpu_custom_call.1} parent=1 // pred_check
      _
    $region15: #{tpu_custom_call.1} parent=1 // pred_check_branch
      %47 = sbr.rel (0) target = $region17
    $region16: #{tpu_custom_call.1} parent=1 // pred_region
      %s49 = ssub.s32 64, 64
      %50 = vsyncadd [#allocation4], %s49
      %s52 = sshll.u32 [#allocation5], 4
      %s53 = int_to_ptr.vmem [resolvable:$true] %s52
      %55 = dma.vmem_to_hbm [thread:$0]  %s53, 64, %s2, [#allocation4]
    $region17: #{tpu_custom_call.1} parent=1 // pred_fallthru
      _
    // Predicated region
    $region18: #{tpu_custom_call.1} parent=1 // pred_check
      _
    $region19: #{tpu_custom_call.1} parent=1 // pred_check_branch
      %57 = sbr.rel (0) target = $region21
    $region20: #{tpu_custom_call.1} parent=1 // pred_region
      %58 = dma.done [#allocation4], 64
    $region21: #{tpu_custom_call.1} parent=1 // pred_fallthru
      _
    %59 = vsyncpa [#allocation3], 1
    %60 = vsyncpa [#allocation4], 1

</llo_original>
